<compile_context>
chip_gen: v7x
topology: tpu7x:2x2x1
jax: 0.10.0
libtpu: 0.0.40
codegen_flags: <defaults>
</compile_context>

<pallas_src>
import jax
import jax.numpy as jnp
from jax.experimental import pallas as pl
from jax.experimental.pallas import tpu as pltpu

MC_IMAGE_MEAN = (0.3331, 0.3245, 0.3051)
MC_IMAGE_STD = (0.2439, 0.2493, 0.2873)

_LANE = 128


def _round_up(x, m):
    return (x + m - 1) // m * m


def _pick_tk(P, max_tk=1024):
    """Largest multiple of 128 that divides P and is <= max_tk."""
    best = None
    for tk in range(_LANE, min(P, max_tk) + 1, _LANE):
        if P % tk == 0:
            best = tk
    assert best is not None, f"pixel dim {P} must be a multiple of {_LANE}"
    return best


def _pick_tb(B):
    """Batch tile: prefer multiples of 8 (sublane-aligned output rows)."""
    for tb in (256, 128, 64, 32, 16, 8):
        if B % tb == 0:
            return tb
    return B


# ---------------------------------------------------------------------------
# Single fused kernel:
#   image encoder (preprocess folded into weights) + temporal mean-pool
#   + (temporal linear ∘ reward head) folded into one epilogue matmul.
# ---------------------------------------------------------------------------
def _video_reward_kernel(frames_ref, w_eff_ref, b_eff_ref, w_vr_ref, b_vr_ref,
                         out_ref, acc_ref):
    # frames_ref: (tb, L, tk) bf16 raw pixels (normalization folded into w/b)
    # w_eff_ref : (tk, Fp)   bf16   b_eff_ref: (1, Fp) f32
    # w_vr_ref  : (Fp, Dp)   f32    b_vr_ref : (1, Dp) f32
    # acc_ref   : (tb, Fp)   f32 running sum over frames & pixel chunks
    k = pl.program_id(1)

    @pl.when(k == 0)
    def _():
        acc_ref[...] = jnp.zeros_like(acc_ref)

    # The mean-pool over L commutes with the (linear) image encoder, so sum
    # raw pixels over the L frames first (exact in f32 for 0..255 pixels),
    # then do a single bf16 matmul per pixel chunk -> L x fewer MXU passes.
    L = frames_ref.shape[1]
    xs = frames_ref[:, 0, :].astype(jnp.float32)
    for l in range(1, L):                      # static, unrolled
        xs = xs + frames_ref[:, l, :].astype(jnp.float32)

    acc_ref[...] += jnp.dot(xs.astype(jnp.bfloat16), w_eff_ref[...],
                            preferred_element_type=jnp.float32)

    @pl.when(k == pl.num_programs(1) - 1)
    def _():
        # pooled image features = (sum over L of frame @ w_eff) / L + b_eff
        pooled = acc_ref[...] * (1.0 / L) + b_eff_ref[...]          # (tb, Fp)
        # fused temporal-encoder + reward-head linear (w_vr = w_tmp @ w_rw),
        # kept in f32: it is tiny and avoids an extra rounding step.
        out_ref[...] = (jnp.dot(pooled, w_vr_ref[...],
                                preferred_element_type=jnp.float32)
                        + b_vr_ref[...]).astype(out_ref.dtype)


def _fused_video_reward(frames, w_eff, b_eff, w_vr, b_vr, *, tb, tk):
    B, L, P = frames.shape
    Fp = w_eff.shape[1]
    Dp = w_vr.shape[1]
    grid = (B // tb, P // tk)
    return pl.pallas_call(
        _video_reward_kernel,
        out_shape=jax.ShapeDtypeStruct((B, Dp), jnp.float32),
        grid_spec=pltpu.PrefetchScalarGridSpec(
            num_scalar_prefetch=0,
            grid=grid,
            in_specs=[
                pl.BlockSpec((tb, L, tk), lambda b, k: (b, 0, k)),  # frames
                pl.BlockSpec((tk, Fp), lambda b, k: (k, 0)),        # w_eff
                pl.BlockSpec((1, Fp), lambda b, k: (0, 0)),         # b_eff
                pl.BlockSpec((Fp, Dp), lambda b, k: (0, 0)),        # w_vr
                pl.BlockSpec((1, Dp), lambda b, k: (0, 0)),         # b_vr
            ],
            out_specs=pl.BlockSpec((tb, Dp), lambda b, k: (b, 0)),
            scratch_shapes=[pltpu.VMEM((tb, Fp), jnp.float32)],
        ),
        compiler_params=pltpu.CompilerParams(
            dimension_semantics=("parallel", "arbitrary"),
            vmem_limit_bytes=32 * 1024 * 1024,
        ),
    )(frames, w_eff, b_eff, w_vr, b_vr)


# ---------------------------------------------------------------------------
# Full forward (raw-pixel path of VideoRewardBase.forward)
# ---------------------------------------------------------------------------
def video_reward_forward(videos, params):
    # TODO(synk): text_tokens-conditioned reward head, softmax=True branch and
    # image_encoder.recorded_blocks have no synthetic equivalent here.
    B, L, C, H, W = videos.shape
    assert C == len(MC_IMAGE_MEAN), "mineclip stats are 3-channel"
    P = C * H * W
    F = params["w_img"].shape[1]
    D = params["w_rw"].shape[1]

    mean_p = jnp.repeat(jnp.asarray(MC_IMAGE_MEAN, jnp.float32), H * W)  # [P]
    std_p = jnp.repeat(jnp.asarray(MC_IMAGE_STD, jnp.float32), H * W)    # [P]

    # Fold basic_image_tensor_preprocess into the image-encoder linear:
    #   ((x/255 - mean)/std) @ W + b  ==  x @ (W/(255*std)) + (b - (mean/std)@W)
    w_eff = params["w_img"] / (255.0 * std_p)[:, None]                   # [P, F]
    b_eff = params["b_img"] - (mean_p / std_p) @ params["w_img"]         # [1, F]

    # Fold temporal-encoder linear + reward head (no nonlinearity between):
    w_vr = params["w_tmp"] @ params["w_rw"]                              # [F, D]
    b_vr = params["b_tmp"] @ params["w_rw"] + params["b_rw"]             # [1, D]

    # Zero-pad feature / reward lanes to multiples of 128 (lane-dense stores,
    # full MXU columns); padding is sliced off after the kernel.
    Fp = _round_up(F, _LANE)
    Dp = _round_up(D, _LANE)
    w_eff_p = jnp.pad(w_eff, ((0, 0), (0, Fp - F))).astype(jnp.bfloat16)
    b_eff_p = jnp.pad(b_eff, ((0, 0), (0, Fp - F))).astype(jnp.float32)
    w_vr_p = jnp.pad(w_vr, ((0, Fp - F), (0, Dp - D))).astype(jnp.float32)
    b_vr_p = jnp.pad(b_vr, ((0, 0), (0, Dp - D))).astype(jnp.float32)

    # Raw pixels as bf16 (exact for 0..255 integer pixel values): halves HBM
    # traffic vs f32 and feeds the MXU's native bf16 datapath.
    # TODO(synk): for real uint8 video buffers, feed uint8 straight into the
    # kernel and convert after the DMA for another 2x HBM saving.
    frames = videos.reshape(B, L, P).astype(jnp.bfloat16)

    tk = _pick_tk(P)
    tb = _pick_tb(B)
    assert B % tb == 0 and P % tk == 0

    out = _fused_video_reward(frames, w_eff_p, b_eff_p, w_vr_p, b_vr_p,
                              tb=tb, tk=tk)                              # [B, Dp]
    return out[:, :D]


def init_params(key, *, C, H, W, F, D):
    P = C * H * W
    k1, k2, k3, k4, k5, k6 = jax.random.split(key, 6)
    return {
        "w_img": jax.random.normal(k1, (P, F), jnp.float32) / jnp.sqrt(P),
        "b_img": 0.1 * jax.random.normal(k4, (1, F), jnp.float32),
        "w_tmp": jax.random.normal(k2, (F, F), jnp.float32) / jnp.sqrt(F),
        "b_tmp": 0.1 * jax.random.normal(k5, (1, F), jnp.float32),
        "w_rw": jax.random.normal(k3, (F, D), jnp.float32) / jnp.sqrt(F),
        "b_rw": 0.1 * jax.random.normal(k6, (1, D), jnp.float32),
    }


if __name__ == "__main__":
    B, L, C, H, W = 2, 8, 3, 16, 16
    F, D = 32, 8

    key = jax.random.PRNGKey(0)
    kv, kp = jax.random.split(key)
    # integer-valued raw pixels in [0, 255] (exactly representable in bf16)
    videos = jnp.round(jax.random.uniform(kv, (B, L, C, H, W), jnp.float32,
                                          minval=0.0, maxval=255.0))
    params = init_params(kp, C=C, H=H, W=W, F=F, D=D)

    rewards = jax.jit(video_reward_forward)(videos, params)
    rewards = jax.block_until_ready(rewards)
    assert rewards.shape == (B, D), rewards.shape

    # Reference: the original (un-folded, un-fused) forward path in f32.
    mean_p = jnp.repeat(jnp.asarray(MC_IMAGE_MEAN, jnp.float32), H * W)
    std_p = jnp.repeat(jnp.asarray(MC_IMAGE_STD, jnp.float32), H * W)
    x = (videos.reshape(B * L, C * H * W) / 255.0 - mean_p) / std_p
    img = x @ params["w_img"] + params["b_img"]
    pooled = jnp.mean(img.reshape(B, L, F), axis=1)
    vid = pooled @ params["w_tmp"] + params["b_tmp"]
    ref = vid @ params["w_rw"] + params["b_rw"]

    # bf16 frames/weights in the kernel -> loosened tolerance vs f32 reference.
    assert jnp.allclose(rewards, ref, atol=5e-2, rtol=5e-2), (
        float(jnp.max(jnp.abs(rewards - ref))))
    print("KERNEL_OK")
</pallas_src>

<mosaic_0001>
module attributes {stable_mosaic.version = 11 : i64} {
  func.func @_video_reward_kernel(%arg0: i32, %arg1: i32, %arg2: memref<2x8x768xbf16, #tpu.memory_space<vmem>>, %arg3: memref<768x128xbf16, #tpu.memory_space<vmem>>, %arg4: memref<1x128xf32, #tpu.memory_space<vmem>>, %arg5: memref<128x128xf32, #tpu.memory_space<vmem>>, %arg6: memref<1x128xf32, #tpu.memory_space<vmem>>, %arg7: memref<2x128xf32, #tpu.memory_space<vmem>>, %arg8: memref<2x128xf32, #tpu.memory_space<vmem>>) attributes {dimension_semantics = [#tpu.dimension_semantics<parallel>, #tpu.dimension_semantics<arbitrary>], iteration_bounds = array<i64: 1, 1>, scalar_prefetch = 0 : i64, scratch_operands = 1 : i64, tpu.core_type = #tpu.core_type<tc>, window_params = [{transform_indices = @transform_0, window_bounds = array<i64: 2, 8, 768>}, {transform_indices = @transform_1, window_bounds = array<i64: 768, 128>}, {pipeline_mode = #tpu.pipeline_mode<synchronous>, transform_indices = @transform_2, window_bounds = array<i64: 1, 128>}, {pipeline_mode = #tpu.pipeline_mode<synchronous>, transform_indices = @transform_3, window_bounds = array<i64: 128, 128>}, {pipeline_mode = #tpu.pipeline_mode<synchronous>, transform_indices = @transform_4, window_bounds = array<i64: 1, 128>}, {transform_indices = @transform_5, window_bounds = array<i64: 2, 128>}]} {
    %c0_i32 = arith.constant 0 : i32
    %0 = arith.cmpi eq, %arg1, %c0_i32 : i32
    %1 = arith.extui %0 : i1 to i32
    %c0_i32_0 = arith.constant 0 : i32
    %2 = arith.cmpi ne, %1, %c0_i32_0 : i32
    scf.if %2 {
      %cst_25 = arith.constant 0.000000e+00 : f32
      %43 = vector.broadcast %cst_25 : f32 to vector<2x128xf32>
      %c0_26 = arith.constant 0 : index
      %c0_27 = arith.constant 0 : index
      %44 = vector.load %arg8[%c0_26, %c0_27] : memref<2x128xf32, #tpu.memory_space<vmem>>, vector<2x128xf32>
      tpu.vector_store %arg8[%c0_26, %c0_27], %43 {strides = array<i32>} : memref<2x128xf32, #tpu.memory_space<vmem>>, vector<2x128xf32>,
    } else {
    }
    %c0 = arith.constant 0 : index
    %c0_1 = arith.constant 0 : index
    %c0_2 = arith.constant 0 : index
    %3 = vector.load %arg2[%c0, %c0_1, %c0_2] : memref<2x8x768xbf16, #tpu.memory_space<vmem>>, vector<2x1x768xbf16>
    %4 = vector.shape_cast %3 : vector<2x1x768xbf16> to vector<2x768xbf16>
    %5 = arith.extf %4 : vector<2x768xbf16> to vector<2x768xf32>
    %c0_3 = arith.constant 0 : index
    %c1 = arith.constant 1 : index
    %c0_4 = arith.constant 0 : index
    %6 = vector.load %arg2[%c0_3, %c1, %c0_4] : memref<2x8x768xbf16, #tpu.memory_space<vmem>>, vector<2x1x768xbf16>
    %7 = vector.shape_cast %6 : vector<2x1x768xbf16> to vector<2x768xbf16>
    %8 = arith.extf %7 : vector<2x768xbf16> to vector<2x768xf32>
    %9 = arith.addf %5, %8 : vector<2x768xf32>
    %c0_5 = arith.constant 0 : index
    %c2 = arith.constant 2 : index
    %c0_6 = arith.constant 0 : index
    %10 = vector.load %arg2[%c0_5, %c2, %c0_6] : memref<2x8x768xbf16, #tpu.memory_space<vmem>>, vector<2x1x768xbf16>
    %11 = vector.shape_cast %10 : vector<2x1x768xbf16> to vector<2x768xbf16>
    %12 = arith.extf %11 : vector<2x768xbf16> to vector<2x768xf32>
    %13 = arith.addf %9, %12 : vector<2x768xf32>
    %c0_7 = arith.constant 0 : index
    %c3 = arith.constant 3 : index
    %c0_8 = arith.constant 0 : index
    %14 = vector.load %arg2[%c0_7, %c3, %c0_8] : memref<2x8x768xbf16, #tpu.memory_space<vmem>>, vector<2x1x768xbf16>
    %15 = vector.shape_cast %14 : vector<2x1x768xbf16> to vector<2x768xbf16>
    %16 = arith.extf %15 : vector<2x768xbf16> to vector<2x768xf32>
    %17 = arith.addf %13, %16 : vector<2x768xf32>
    %c0_9 = arith.constant 0 : index
    %c4 = arith.constant 4 : index
    %c0_10 = arith.constant 0 : index
    %18 = vector.load %arg2[%c0_9, %c4, %c0_10] : memref<2x8x768xbf16, #tpu.memory_space<vmem>>, vector<2x1x768xbf16>
    %19 = vector.shape_cast %18 : vector<2x1x768xbf16> to vector<2x768xbf16>
    %20 = arith.extf %19 : vector<2x768xbf16> to vector<2x768xf32>
    %21 = arith.addf %17, %20 : vector<2x768xf32>
    %c0_11 = arith.constant 0 : index
    %c5 = arith.constant 5 : index
    %c0_12 = arith.constant 0 : index
    %22 = vector.load %arg2[%c0_11, %c5, %c0_12] : memref<2x8x768xbf16, #tpu.memory_space<vmem>>, vector<2x1x768xbf16>
    %23 = vector.shape_cast %22 : vector<2x1x768xbf16> to vector<2x768xbf16>
    %24 = arith.extf %23 : vector<2x768xbf16> to vector<2x768xf32>
    %25 = arith.addf %21, %24 : vector<2x768xf32>
    %c0_13 = arith.constant 0 : index
    %c6 = arith.constant 6 : index
    %c0_14 = arith.constant 0 : index
    %26 = vector.load %arg2[%c0_13, %c6, %c0_14] : memref<2x8x768xbf16, #tpu.memory_space<vmem>>, vector<2x1x768xbf16>
    %27 = vector.shape_cast %26 : vector<2x1x768xbf16> to vector<2x768xbf16>
    %28 = arith.extf %27 : vector<2x768xbf16> to vector<2x768xf32>
    %29 = arith.addf %25, %28 : vector<2x768xf32>
    %c0_15 = arith.constant 0 : index
    %c7 = arith.constant 7 : index
    %c0_16 = arith.constant 0 : index
    %30 = vector.load %arg2[%c0_15, %c7, %c0_16] : memref<2x8x768xbf16, #tpu.memory_space<vmem>>, vector<2x1x768xbf16>
    %31 = vector.shape_cast %30 : vector<2x1x768xbf16> to vector<2x768xbf16>
    %32 = arith.extf %31 : vector<2x768xbf16> to vector<2x768xf32>
    %33 = arith.addf %29, %32 : vector<2x768xf32>
    %c0_17 = arith.constant 0 : index
    %c0_18 = arith.constant 0 : index
    %34 = vector.load %arg8[%c0_17, %c0_18] : memref<2x128xf32, #tpu.memory_space<vmem>>, vector<2x128xf32>
    %35 = arith.truncf %33 : vector<2x768xf32> to vector<2x768xbf16>
    %c0_19 = arith.constant 0 : index
    %c0_20 = arith.constant 0 : index
    %36 = vector.load %arg3[%c0_19, %c0_20] : memref<768x128xbf16, #tpu.memory_space<vmem>>, vector<768x128xbf16>
    %cst = arith.constant dense<0.000000e+00> : vector<2x128xf32>
    %37 = tpu.matmul %35, %36, %cst {dimension_numbers = #tpu.dot_dimension_numbers<[1], [0], [0], [1], [0, 0, 1, 1], [], []>} : vector<2x768xbf16>, vector<768x128xbf16>, vector<2x128xf32> -> vector<2x128xf32>
    %38 = arith.addf %34, %37 : vector<2x128xf32>
    %c0_21 = arith.constant 0 : index
    %c0_22 = arith.constant 0 : index
    %39 = vector.load %arg8[%c0_21, %c0_22] : memref<2x128xf32, #tpu.memory_space<vmem>>, vector<2x128xf32>
    tpu.vector_store %arg8[%c0_21, %c0_22], %38 {strides = array<i32>} : memref<2x128xf32, #tpu.memory_space<vmem>>, vector<2x128xf32>,
    %c0_i32_23 = arith.constant 0 : i32
    %40 = arith.cmpi eq, %arg1, %c0_i32_23 : i32
    %41 = arith.extui %40 : i1 to i32
    %c0_i32_24 = arith.constant 0 : i32
    %42 = arith.cmpi ne, %41, %c0_i32_24 : i32
    scf.if %42 {
      %c0_25 = arith.constant 0 : index
      %c0_26 = arith.constant 0 : index
      %43 = vector.load %arg8[%c0_25, %c0_26] : memref<2x128xf32, #tpu.memory_space<vmem>>, vector<2x128xf32>
      %cst_27 = arith.constant 1.250000e-01 : f32
      %44 = vector.broadcast %cst_27 : f32 to vector<2x128xf32>
      %45 = arith.mulf %43, %44 : vector<2x128xf32>
      %c0_28 = arith.constant 0 : index
      %c0_29 = arith.constant 0 : index
      %46 = vector.load %arg4[%c0_28, %c0_29] : memref<1x128xf32, #tpu.memory_space<vmem>>, vector<1x128xf32>
      %47 = vector.broadcast %46 : vector<1x128xf32> to vector<2x128xf32>
      %48 = arith.addf %45, %47 : vector<2x128xf32>
      %c0_30 = arith.constant 0 : index
      %c0_31 = arith.constant 0 : index
      %49 = vector.load %arg5[%c0_30, %c0_31] : memref<128x128xf32, #tpu.memory_space<vmem>>, vector<128x128xf32>
      %cst_32 = arith.constant dense<0.000000e+00> : vector<2x128xf32>
      %50 = tpu.matmul %48, %49, %cst_32 {dimension_numbers = #tpu.dot_dimension_numbers<[1], [0], [0], [1], [0, 0, 1, 1], [], []>} : vector<2x128xf32>, vector<128x128xf32>, vector<2x128xf32> -> vector<2x128xf32>
      %c0_33 = arith.constant 0 : index
      %c0_34 = arith.constant 0 : index
      %51 = vector.load %arg6[%c0_33, %c0_34] : memref<1x128xf32, #tpu.memory_space<vmem>>, vector<1x128xf32>
      %52 = vector.broadcast %51 : vector<1x128xf32> to vector<2x128xf32>
      %53 = arith.addf %50, %52 : vector<2x128xf32>
      %c0_35 = arith.constant 0 : index
      %c0_36 = arith.constant 0 : index
      %54 = vector.load %arg7[%c0_35, %c0_36] : memref<2x128xf32, #tpu.memory_space<vmem>>, vector<2x128xf32>
      tpu.vector_store %arg7[%c0_35, %c0_36], %53 {strides = array<i32>} : memref<2x128xf32, #tpu.memory_space<vmem>>, vector<2x128xf32>,
    } else {
    }
    return
  }
  func.func @transform_0(%arg0: i32, %arg1: i32) -> (i32, i32, i32) {
    %c0_i32 = arith.constant 0 : i32
    %c0_i32_0 = arith.constant 0 : i32
    return %arg0, %c0_i32, %arg1 : i32, i32, i32
  }
  func.func @transform_1(%arg0: i32, %arg1: i32) -> (i32, i32) {
    %c0_i32 = arith.constant 0 : i32
    %c0_i32_0 = arith.constant 0 : i32
    return %arg1, %c0_i32 : i32, i32
  }
  func.func @transform_2(%arg0: i32, %arg1: i32) -> (i32, i32) {
    %c0_i32 = arith.constant 0 : i32
    %c0_i32_0 = arith.constant 0 : i32
    %c0_i32_1 = arith.constant 0 : i32
    return %c0_i32, %c0_i32_0 : i32, i32
  }
  func.func @transform_3(%arg0: i32, %arg1: i32) -> (i32, i32) {
    %c0_i32 = arith.constant 0 : i32
    %c0_i32_0 = arith.constant 0 : i32
    %c0_i32_1 = arith.constant 0 : i32
    return %c0_i32, %c0_i32_0 : i32, i32
  }
  func.func @transform_4(%arg0: i32, %arg1: i32) -> (i32, i32) {
    %c0_i32 = arith.constant 0 : i32
    %c0_i32_0 = arith.constant 0 : i32
    %c0_i32_1 = arith.constant 0 : i32
    return %c0_i32, %c0_i32_0 : i32, i32
  }
  func.func @transform_5(%arg0: i32, %arg1: i32) -> (i32, i32) {
    %c0_i32 = arith.constant 0 : i32
    %c0_i32_0 = arith.constant 0 : i32
    return %arg0, %c0_i32 : i32, i32
  }
}

</mosaic_0001>

<llo_original>
// kernel: video_reward_forward.1
$region0: #{video_reward_forward.1}
  #allocation0 [shape = 'u32[]', space=smem, size = 0x4, offset = 0x4, fixed_abs, tag = 'smem constant byte address 0x4 - core index']
  #allocation1 [shape = 'u32[144,128]{1,0:T(1,128)}', space=vmem, size = 0x12000, scoped, tag = 'internal scratch']
  #allocation2 [shape = 'f32[2,128]{1,0:T(2,128)}', space=vmem, size = 0x400, scoped, tag = 'scratch operand']
  %s0 = inlined_call_operand.vmem [shape: bf16[2,8,768], index: 0, kind: input, shape index: {}]
  %s1 = inlined_call_operand.vmem [shape: bf16[768,128], index: 1, kind: input, shape index: {}]
  %s2 = inlined_call_operand.vmem [shape: f32[1,128], index: 2, kind: input, shape index: {}]
  %s3 = inlined_call_operand.vmem [shape: f32[128,128], index: 3, kind: input, shape index: {}]
  %s4 = inlined_call_operand.vmem [shape: f32[1,128], index: 4, kind: input, shape index: {}]
  %s5 = inlined_call_operand.hbm [shape: f32[2,128], index: 5, kind: output, shape index: {}]
  %s6 = sld [smem:[#allocation0]]
  $region38: #{video_reward_forward.1} parent=0
    _
  %s8 = ssub.s32 1, %s6
  %s9 = scalar_select 0, %s8, %s6
  $region1: #{video_reward_forward.1} parent=0
    #allocation3 [shape = 'u8[1024]{0}', space=vmem, size = 0x400, scoped, tag = 'output window, operand 0, single buffered']
    #allocation4 [shape = 's32[1]{0}', space=sflag, size = 0x4, scoped, tag = 'scoped memory for video_reward_forward.1']
    %10 = vsyncpa [#allocation4], 0
    // Predicated region
    $region2: #{video_reward_forward.1} parent=1 // pred_check
      _
    $region3: #{video_reward_forward.1} parent=1 // pred_check_branch
      %12 = sbr.rel (0) target = $region5
    $region4: #{video_reward_forward.1} parent=1 // pred_region
      _
    $region5: #{video_reward_forward.1} parent=1 // pred_fallthru
      _
    // Predicated region
    $region6: #{video_reward_forward.1} parent=1 // pred_check
      _
    $region7: #{video_reward_forward.1} parent=1 // pred_check_branch
      %14 = sbr.rel (0) target = $region9
    $region8: #{video_reward_forward.1} parent=1 // pred_region
      _
    $region9: #{video_reward_forward.1} parent=1 // pred_fallthru
      _
    // Predicated region
    $region10: #{video_reward_forward.1} parent=1 // pred_check
      _
    $region11: #{video_reward_forward.1} parent=1 // pred_check_branch
      %16 = sbr.rel (0) target = $region13
    $region12: #{video_reward_forward.1} parent=1 // pred_region
      _
    $region13: #{video_reward_forward.1} parent=1 // pred_fallthru
      _
    // Predicated region
    $region14: #{video_reward_forward.1} parent=1 // pred_check
      _
    $region15: #{video_reward_forward.1} parent=1 // pred_check_branch
      %18 = sbr.rel (0) target = $region17
    $region16: #{video_reward_forward.1} parent=1 // pred_region
      _
    $region17: #{video_reward_forward.1} parent=1 // pred_fallthru
      _
    // Predicated region
    $region18: #{video_reward_forward.1} parent=1 // pred_check
      _
    $region19: #{video_reward_forward.1} parent=1 // pred_check_branch
      %20 = sbr.rel (0) target = $region21
    $region20: #{video_reward_forward.1} parent=1 // pred_region
      _
    $region21: #{video_reward_forward.1} parent=1 // pred_fallthru
      _
    %p22 = scmp.eq.s32.totalorder 0, 0
    // Predicated region
    $region22: #{video_reward_forward.1} parent=1 // pred_check
      %p23 = pneg %p22
    $region23: #{video_reward_forward.1} parent=1 // pred_check_branch
      %25 = sbr.rel (%p23) target = $region25
    $region24: #{video_reward_forward.1} parent=1 // pred_region
      %26 = vst [vmem:[#allocation2] sm:$0x3] 0.0
    $region25: #{video_reward_forward.1} parent=1 // pred_fallthru
      _
    %v27 = vld [vmem:[%s0] sm:$0x11]
    %v28 = vld [vmem:[%s0 + $0x8] sm:$0x11]
    %v29 = vld [vmem:[%s0 + $0x10] sm:$0x11]
    %v30 = vld [vmem:[%s0 + $0x18] sm:$0x11]
    %v31 = vld [vmem:[%s0 + $0x20] sm:$0x11]
    %v32 = vld [vmem:[%s0 + $0x28] sm:$0x11]
    %v33 = vunpack.c.l.bf16 %v27
    %v34 = vunpack.c.h.bf16 %v27
    %v35 = vunpack.c.l.bf16 %v28
    %v36 = vunpack.c.h.bf16 %v28
    %v37 = vunpack.c.l.bf16 %v29
    %v38 = vunpack.c.h.bf16 %v29
    %v39 = vunpack.c.l.bf16 %v30
    %v40 = vunpack.c.h.bf16 %v30
    %v41 = vunpack.c.l.bf16 %v31
    %v42 = vunpack.c.h.bf16 %v31
    %v43 = vunpack.c.l.bf16 %v32
    %v44 = vunpack.c.h.bf16 %v32
    %v57 = vrot.slane %v33, 1
    %v58 = vrot.slane %v34, 1
    %v59 = vrot.slane %v35, 1
    %v60 = vrot.slane %v36, 1
    %v61 = vrot.slane %v37, 1
    %v62 = vrot.slane %v38, 1
    %v63 = vrot.slane %v39, 1
    %v64 = vrot.slane %v40, 1
    %v65 = vrot.slane %v41, 1
    %v66 = vrot.slane %v42, 1
    %v67 = vrot.slane %v43, 1
    %v68 = vrot.slane %v44, 1
    %v81 = vadd.f32 %v33, %v57
    %v82 = vadd.f32 %v34, %v58
    %v83 = vadd.f32 %v35, %v59
    %v84 = vadd.f32 %v36, %v60
    %v85 = vadd.f32 %v37, %v61
    %v86 = vadd.f32 %v38, %v62
    %v87 = vadd.f32 %v39, %v63
    %v88 = vadd.f32 %v40, %v64
    %v89 = vadd.f32 %v41, %v65
    %v90 = vadd.f32 %v42, %v66
    %v91 = vadd.f32 %v43, %v67
    %v92 = vadd.f32 %v44, %v68
    %v93 = vld [vmem:[%s0] sm:$0x22]
    %v94 = vld [vmem:[%s0 + $0x8] sm:$0x22]
    %v95 = vld [vmem:[%s0 + $0x10] sm:$0x22]
    %v96 = vld [vmem:[%s0 + $0x18] sm:$0x22]
    %v97 = vld [vmem:[%s0 + $0x20] sm:$0x22]
    %v98 = vld [vmem:[%s0 + $0x28] sm:$0x22]
    %v99 = vunpack.c.l.bf16 %v93
    %v100 = vunpack.c.h.bf16 %v93
    %v101 = vunpack.c.l.bf16 %v94
    %v102 = vunpack.c.h.bf16 %v94
    %v103 = vunpack.c.l.bf16 %v95
    %v104 = vunpack.c.h.bf16 %v95
    %v105 = vunpack.c.l.bf16 %v96
    %v106 = vunpack.c.h.bf16 %v96
    %v107 = vunpack.c.l.bf16 %v97
    %v108 = vunpack.c.h.bf16 %v97
    %v109 = vunpack.c.l.bf16 %v98
    %v110 = vunpack.c.h.bf16 %v98
    %v123 = vrot.slane %v99, 2
    %v124 = vrot.slane %v100, 2
    %v125 = vrot.slane %v101, 2
    %v126 = vrot.slane %v102, 2
    %v127 = vrot.slane %v103, 2
    %v128 = vrot.slane %v104, 2
    %v129 = vrot.slane %v105, 2
    %v130 = vrot.slane %v106, 2
    %v131 = vrot.slane %v107, 2
    %v132 = vrot.slane %v108, 2
    %v133 = vrot.slane %v109, 2
    %v134 = vrot.slane %v110, 2
    %v147 = vadd.f32 %v81, %v123
    %v148 = vadd.f32 %v82, %v124
    %v149 = vadd.f32 %v83, %v125
    %v150 = vadd.f32 %v84, %v126
    %v151 = vadd.f32 %v85, %v127
    %v152 = vadd.f32 %v86, %v128
    %v153 = vadd.f32 %v87, %v129
    %v154 = vadd.f32 %v88, %v130
    %v155 = vadd.f32 %v89, %v131
    %v156 = vadd.f32 %v90, %v132
    %v157 = vadd.f32 %v91, %v133
    %v158 = vadd.f32 %v92, %v134
    %v159 = vrot.slane %v99, 3
    %v160 = vrot.slane %v100, 3
    %v161 = vrot.slane %v101, 3
    %v162 = vrot.slane %v102, 3
    %v163 = vrot.slane %v103, 3
    %v164 = vrot.slane %v104, 3
    %v165 = vrot.slane %v105, 3
    %v166 = vrot.slane %v106, 3
    %v167 = vrot.slane %v107, 3
    %v168 = vrot.slane %v108, 3
    %v169 = vrot.slane %v109, 3
    %v170 = vrot.slane %v110, 3
    %v183 = vadd.f32 %v147, %v159
    %v184 = vadd.f32 %v148, %v160
    %v185 = vadd.f32 %v149, %v161
    %v186 = vadd.f32 %v150, %v162
    %v187 = vadd.f32 %v151, %v163
    %v188 = vadd.f32 %v152, %v164
    %v189 = vadd.f32 %v153, %v165
    %v190 = vadd.f32 %v154, %v166
    %v191 = vadd.f32 %v155, %v167
    %v192 = vadd.f32 %v156, %v168
    %v193 = vadd.f32 %v157, %v169
    %v194 = vadd.f32 %v158, %v170
    %v195 = vld [vmem:[%s0] sm:$0x44]
    %v196 = vld [vmem:[%s0 + $0x8] sm:$0x44]
    %v197 = vld [vmem:[%s0 + $0x10] sm:$0x44]
    %v198 = vld [vmem:[%s0 + $0x18] sm:$0x44]
    %v199 = vld [vmem:[%s0 + $0x20] sm:$0x44]
    %v200 = vld [vmem:[%s0 + $0x28] sm:$0x44]
    %v201 = vunpack.c.l.bf16 %v195
    %v202 = vunpack.c.h.bf16 %v195
    %v203 = vunpack.c.l.bf16 %v196
    %v204 = vunpack.c.h.bf16 %v196
    %v205 = vunpack.c.l.bf16 %v197
    %v206 = vunpack.c.h.bf16 %v197
    %v207 = vunpack.c.l.bf16 %v198
    %v208 = vunpack.c.h.bf16 %v198
    %v209 = vunpack.c.l.bf16 %v199
    %v210 = vunpack.c.h.bf16 %v199
    %v211 = vunpack.c.l.bf16 %v200
    %v212 = vunpack.c.h.bf16 %v200
    %v225 = vrot.slane %v201, 4
    %v226 = vrot.slane %v202, 4
    %v227 = vrot.slane %v203, 4
    %v228 = vrot.slane %v204, 4
    %v229 = vrot.slane %v205, 4
    %v230 = vrot.slane %v206, 4
    %v231 = vrot.slane %v207, 4
    %v232 = vrot.slane %v208, 4
    %v233 = vrot.slane %v209, 4
    %v234 = vrot.slane %v210, 4
    %v235 = vrot.slane %v211, 4
    %v236 = vrot.slane %v212, 4
    %v249 = vadd.f32 %v183, %v225
    %v250 = vadd.f32 %v184, %v226
    %v251 = vadd.f32 %v185, %v227
    %v252 = vadd.f32 %v186, %v228
    %v253 = vadd.f32 %v187, %v229
    %v254 = vadd.f32 %v188, %v230
    %v255 = vadd.f32 %v189, %v231
    %v256 = vadd.f32 %v190, %v232
    %v257 = vadd.f32 %v191, %v233
    %v258 = vadd.f32 %v192, %v234
    %v259 = vadd.f32 %v193, %v235
    %v260 = vadd.f32 %v194, %v236
    %v261 = vrot.slane %v201, 5
    %v262 = vrot.slane %v202, 5
    %v263 = vrot.slane %v203, 5
    %v264 = vrot.slane %v204, 5
    %v265 = vrot.slane %v205, 5
    %v266 = vrot.slane %v206, 5
    %v267 = vrot.slane %v207, 5
    %v268 = vrot.slane %v208, 5
    %v269 = vrot.slane %v209, 5
    %v270 = vrot.slane %v210, 5
    %v271 = vrot.slane %v211, 5
    %v272 = vrot.slane %v212, 5
    %v285 = vadd.f32 %v249, %v261
    %v286 = vadd.f32 %v250, %v262
    %v287 = vadd.f32 %v251, %v263
    %v288 = vadd.f32 %v252, %v264
    %v289 = vadd.f32 %v253, %v265
    %v290 = vadd.f32 %v254, %v266
    %v291 = vadd.f32 %v255, %v267
    %v292 = vadd.f32 %v256, %v268
    %v293 = vadd.f32 %v257, %v269
    %v294 = vadd.f32 %v258, %v270
    %v295 = vadd.f32 %v259, %v271
    %v296 = vadd.f32 %v260, %v272
    %v297 = vld [vmem:[%s0] sm:$0x88]
    %v298 = vld [vmem:[%s0 + $0x8] sm:$0x88]
    %v299 = vld [vmem:[%s0 + $0x10] sm:$0x88]
    %v300 = vld [vmem:[%s0 + $0x18] sm:$0x88]
    %v301 = vld [vmem:[%s0 + $0x20] sm:$0x88]
    %v302 = vld [vmem:[%s0 + $0x28] sm:$0x88]
    %v303 = vunpack.c.l.bf16 %v297
    %v304 = vunpack.c.h.bf16 %v297
    %v305 = vunpack.c.l.bf16 %v298
    %v306 = vunpack.c.h.bf16 %v298
    %v307 = vunpack.c.l.bf16 %v299
    %v308 = vunpack.c.h.bf16 %v299
    %v309 = vunpack.c.l.bf16 %v300
    %v310 = vunpack.c.h.bf16 %v300
    %v311 = vunpack.c.l.bf16 %v301
    %v312 = vunpack.c.h.bf16 %v301
    %v313 = vunpack.c.l.bf16 %v302
    %v314 = vunpack.c.h.bf16 %v302
    %v327 = vrot.slane %v303, 6
    %v328 = vrot.slane %v304, 6
    %v329 = vrot.slane %v305, 6
    %v330 = vrot.slane %v306, 6
    %v331 = vrot.slane %v307, 6
    %v332 = vrot.slane %v308, 6
    %v333 = vrot.slane %v309, 6
    %v334 = vrot.slane %v310, 6
    %v335 = vrot.slane %v311, 6
    %v336 = vrot.slane %v312, 6
    %v337 = vrot.slane %v313, 6
    %v338 = vrot.slane %v314, 6
    %v351 = vadd.f32 %v285, %v327
    %v352 = vadd.f32 %v286, %v328
    %v353 = vadd.f32 %v287, %v329
    %v354 = vadd.f32 %v288, %v330
    %v355 = vadd.f32 %v289, %v331
    %v356 = vadd.f32 %v290, %v332
    %v357 = vadd.f32 %v291, %v333
    %v358 = vadd.f32 %v292, %v334
    %v359 = vadd.f32 %v293, %v335
    %v360 = vadd.f32 %v294, %v336
    %v361 = vadd.f32 %v295, %v337
    %v362 = vadd.f32 %v296, %v338
    %v363 = vrot.slane %v303, 7
    %v364 = vrot.slane %v304, 7
    %v365 = vrot.slane %v305, 7
    %v366 = vrot.slane %v306, 7
    %v367 = vrot.slane %v307, 7
    %v368 = vrot.slane %v308, 7
    %v369 = vrot.slane %v309, 7
    %v370 = vrot.slane %v310, 7
    %v371 = vrot.slane %v311, 7
    %v372 = vrot.slane %v312, 7
    %v373 = vrot.slane %v313, 7
    %v374 = vrot.slane %v314, 7
    %v387 = vadd.f32 %v351, %v363
    %v388 = vadd.f32 %v352, %v364
    %v389 = vadd.f32 %v353, %v365
    %v390 = vadd.f32 %v354, %v366
    %v391 = vadd.f32 %v355, %v367
    %v392 = vadd.f32 %v356, %v368
    %v393 = vadd.f32 %v357, %v369
    %v394 = vadd.f32 %v358, %v370
    %v395 = vadd.f32 %v359, %v371
    %v396 = vadd.f32 %v360, %v372
    %v397 = vadd.f32 %v361, %v373
    %v398 = vadd.f32 %v362, %v374
    %v399 = vld [vmem:[#allocation2] sm:$0x3]
    %v400 = vpack.c.bf16 %v387, %v387
    %v401 = vpack.c.bf16 %v388, %v388
    %v402 = vpack.c.bf16 %v389, %v389
    %v403 = vpack.c.bf16 %v390, %v390
    %v404 = vpack.c.bf16 %v391, %v391
    %v405 = vpack.c.bf16 %v392, %v392
    %v406 = vpack.c.bf16 %v393, %v393
    %v407 = vpack.c.bf16 %v394, %v394
    %v408 = vpack.c.bf16 %v395, %v395
    %v409 = vpack.c.bf16 %v396, %v396
    %v410 = vpack.c.bf16 %v397, %v397
    %v411 = vpack.c.bf16 %v398, %v398
    %v412 = vld [vmem:[%s1] sm:$0xf]
    %v413 = vld [vmem:[%s1 + $0x4] sm:$0xf]
    %v414 = vld [vmem:[%s1 + $0x8] sm:$0xf]
    %v415 = vld [vmem:[%s1 + $0xc] sm:$0xf]
    %v416 = vld [vmem:[%s1 + $0x10] sm:$0xf]
    %v417 = vld [vmem:[%s1 + $0x14] sm:$0xf]
    %v418 = vld [vmem:[%s1 + $0x18] sm:$0xf]
    %v419 = vld [vmem:[%s1 + $0x1c] sm:$0xf]
    %v420 = vld [vmem:[%s1 + $0x20] sm:$0xf]
    %v421 = vld [vmem:[%s1 + $0x24] sm:$0xf]
    %v422 = vld [vmem:[%s1 + $0x28] sm:$0xf]
    %v423 = vld [vmem:[%s1 + $0x2c] sm:$0xf]
    %v424 = vld [vmem:[%s1 + $0x30] sm:$0xf]
    %v425 = vld [vmem:[%s1 + $0x34] sm:$0xf]
    %v426 = vld [vmem:[%s1 + $0x38] sm:$0xf]
    %v427 = vld [vmem:[%s1 + $0x3c] sm:$0xf]
    %v428 = vld [vmem:[%s1 + $0x40] sm:$0xf]
    %v429 = vld [vmem:[%s1 + $0x44] sm:$0xf]
    %v430 = vld [vmem:[%s1 + $0x48] sm:$0xf]
    %v431 = vld [vmem:[%s1 + $0x4c] sm:$0xf]
    %v432 = vld [vmem:[%s1 + $0x50] sm:$0xf]
    %v433 = vld [vmem:[%s1 + $0x54] sm:$0xf]
    %v434 = vld [vmem:[%s1 + $0x58] sm:$0xf]
    %v435 = vld [vmem:[%s1 + $0x5c] sm:$0xf]
    %v436 = vld [vmem:[%s1 + $0x60] sm:$0xf]
    %v437 = vld [vmem:[%s1 + $0x64] sm:$0xf]
    %v438 = vld [vmem:[%s1 + $0x68] sm:$0xf]
    %v439 = vld [vmem:[%s1 + $0x6c] sm:$0xf]
    %v440 = vld [vmem:[%s1 + $0x70] sm:$0xf]
    %v441 = vld [vmem:[%s1 + $0x74] sm:$0xf]
    %v442 = vld [vmem:[%s1 + $0x78] sm:$0xf]
    %v443 = vld [vmem:[%s1 + $0x7c] sm:$0xf]
    %v444 = vld [vmem:[%s1 + $0x80] sm:$0xf]
    %v445 = vld [vmem:[%s1 + $0x84] sm:$0xf]
    %v446 = vld [vmem:[%s1 + $0x88] sm:$0xf]
    %v447 = vld [vmem:[%s1 + $0x8c] sm:$0xf]
    %v448 = vld [vmem:[%s1 + $0x90] sm:$0xf]
    %v449 = vld [vmem:[%s1 + $0x94] sm:$0xf]
    %v450 = vld [vmem:[%s1 + $0x98] sm:$0xf]
    %v451 = vld [vmem:[%s1 + $0x9c] sm:$0xf]
    %v452 = vld [vmem:[%s1 + $0xa0] sm:$0xf]
    %v453 = vld [vmem:[%s1 + $0xa4] sm:$0xf]
    %v454 = vld [vmem:[%s1 + $0xa8] sm:$0xf]
    %v455 = vld [vmem:[%s1 + $0xac] sm:$0xf]
    %v456 = vld [vmem:[%s1 + $0xb0] sm:$0xf]
    %v457 = vld [vmem:[%s1 + $0xb4] sm:$0xf]
    %v458 = vld [vmem:[%s1 + $0xb8] sm:$0xf]
    %v459 = vld [vmem:[%s1 + $0xbc] sm:$0xf]
    %v460 = vld [vmem:[%s1 + $0xc0] sm:$0xf]
    %v461 = vld [vmem:[%s1 + $0xc4] sm:$0xf]
    %v462 = vld [vmem:[%s1 + $0xc8] sm:$0xf]
    %v463 = vld [vmem:[%s1 + $0xcc] sm:$0xf]
    %v464 = vld [vmem:[%s1 + $0xd0] sm:$0xf]
    %v465 = vld [vmem:[%s1 + $0xd4] sm:$0xf]
    %v466 = vld [vmem:[%s1 + $0xd8] sm:$0xf]
    %v467 = vld [vmem:[%s1 + $0xdc] sm:$0xf]
    %v468 = vld [vmem:[%s1 + $0xe0] sm:$0xf]
    %v469 = vld [vmem:[%s1 + $0xe4] sm:$0xf]
    %v470 = vld [vmem:[%s1 + $0xe8] sm:$0xf]
    %v471 = vld [vmem:[%s1 + $0xec] sm:$0xf]
    %v472 = vld [vmem:[%s1 + $0xf0] sm:$0xf]
    %v473 = vld [vmem:[%s1 + $0xf4] sm:$0xf]
    %v474 = vld [vmem:[%s1 + $0xf8] sm:$0xf]
    %v475 = vld [vmem:[%s1 + $0xfc] sm:$0xf]
    %v476 = vld [vmem:[%s1 + $0x100] sm:$0xf]
    %v477 = vld [vmem:[%s1 + $0x104] sm:$0xf]
    %v478 = vld [vmem:[%s1 + $0x108] sm:$0xf]
    %v479 = vld [vmem:[%s1 + $0x10c] sm:$0xf]
    %v480 = vld [vmem:[%s1 + $0x110] sm:$0xf]
    %v481 = vld [vmem:[%s1 + $0x114] sm:$0xf]
    %v482 = vld [vmem:[%s1 + $0x118] sm:$0xf]
    %v483 = vld [vmem:[%s1 + $0x11c] sm:$0xf]
    %v484 = vld [vmem:[%s1 + $0x120] sm:$0xf]
    %v485 = vld [vmem:[%s1 + $0x124] sm:$0xf]
    %v486 = vld [vmem:[%s1 + $0x128] sm:$0xf]
    %v487 = vld [vmem:[%s1 + $0x12c] sm:$0xf]
    %v488 = vld [vmem:[%s1 + $0x130] sm:$0xf]
    %v489 = vld [vmem:[%s1 + $0x134] sm:$0xf]
    %v490 = vld [vmem:[%s1 + $0x138] sm:$0xf]
    %v491 = vld [vmem:[%s1 + $0x13c] sm:$0xf]
    %v492 = vld [vmem:[%s1 + $0x140] sm:$0xf]
    %v493 = vld [vmem:[%s1 + $0x144] sm:$0xf]
    %v494 = vld [vmem:[%s1 + $0x148] sm:$0xf]
    %v495 = vld [vmem:[%s1 + $0x14c] sm:$0xf]
    %v496 = vld [vmem:[%s1 + $0x150] sm:$0xf]
    %v497 = vld [vmem:[%s1 + $0x154] sm:$0xf]
    %v498 = vld [vmem:[%s1 + $0x158] sm:$0xf]
    %v499 = vld [vmem:[%s1 + $0x15c] sm:$0xf]
    %v500 = vld [vmem:[%s1 + $0x160] sm:$0xf]
    %v501 = vld [vmem:[%s1 + $0x164] sm:$0xf]
    %v502 = vld [vmem:[%s1 + $0x168] sm:$0xf]
    %v503 = vld [vmem:[%s1 + $0x16c] sm:$0xf]
    %v504 = vld [vmem:[%s1 + $0x170] sm:$0xf]
    %v505 = vld [vmem:[%s1 + $0x174] sm:$0xf]
    %v506 = vld [vmem:[%s1 + $0x178] sm:$0xf]
    %v507 = vld [vmem:[%s1 + $0x17c] sm:$0xf]
    %v520 = vunpack.c.l.b16 %v400
    %v521 = vunpack.c.l.b16 %v401
    %v522 = vunpack.c.l.b16 %v402
    %v523 = vunpack.c.l.b16 %v403
    %v524 = vunpack.c.l.b16 %v404
    %v525 = vunpack.c.l.b16 %v405
    %v526 = vunpack.c.l.b16 %v406
    %v527 = vunpack.c.l.b16 %v407
    %v528 = vunpack.c.l.b16 %v408
    %v529 = vunpack.c.l.b16 %v409
    %v530 = vunpack.c.l.b16 %v410
    %v531 = vunpack.c.l.b16 %v411
    %v532 = vrot.slane %v526, 7
    %vm533 = vcmask 1041409
    %v534 = vsel %vm533, %v532, %v520
    %v535 = vrot.slane %v527, 7
    %v536 = vsel %vm533, %v535, %v521
    %v537 = vrot.slane %v528, 7
    %v538 = vsel %vm533, %v537, %v522
    %v539 = vrot.slane %v529, 7
    %v540 = vsel %vm533, %v539, %v523
    %v541 = vrot.slane %v530, 7
    %v542 = vsel %vm533, %v541, %v524
    %v543 = vrot.slane %v531, 7
    %v544 = vsel %vm533, %v543, %v525
    %v545 = vpack.c.b16 %v534, %v534
    %v546 = vpack.c.b16 %v536, %v536
    %v547 = vpack.c.b16 %v538, %v538
    %v548 = vpack.c.b16 %v540, %v540
    %v549 = vpack.c.b16 %v542, %v542
    %v550 = vpack.c.b16 %v544, %v544
    %v653 = vunpack.c.l.b16 %v412
    %v654 = vunpack.c.l.b16 %v413
    %v655 = vunpack.c.l.b16 %v414
    %v656 = vunpack.c.l.b16 %v415
    %v657 = vunpack.c.l.b16 %v416
    %v658 = vunpack.c.l.b16 %v417
    %v659 = vunpack.c.l.b16 %v418
    %v660 = vunpack.c.l.b16 %v419
    %v661 = vunpack.c.l.b16 %v420
    %v662 = vunpack.c.l.b16 %v421
    %v663 = vunpack.c.l.b16 %v422
    %v664 = vunpack.c.l.b16 %v423
    %v665 = vunpack.c.l.b16 %v424
    %v666 = vunpack.c.l.b16 %v425
    %v667 = vunpack.c.l.b16 %v426
    %v668 = vunpack.c.l.b16 %v427
    %v669 = vunpack.c.l.b16 %v428
    %v670 = vunpack.c.l.b16 %v429
    %v671 = vunpack.c.l.b16 %v430
    %v672 = vunpack.c.l.b16 %v431
    %v673 = vunpack.c.l.b16 %v432
    %v674 = vunpack.c.l.b16 %v433
    %v675 = vunpack.c.l.b16 %v434
    %v676 = vunpack.c.l.b16 %v435
    %v677 = vunpack.c.l.b16 %v436
    %v678 = vunpack.c.l.b16 %v437
    %v679 = vunpack.c.l.b16 %v438
    %v680 = vunpack.c.l.b16 %v439
    %v681 = vunpack.c.l.b16 %v440
    %v682 = vunpack.c.l.b16 %v441
    %v683 = vunpack.c.l.b16 %v442
    %v684 = vunpack.c.l.b16 %v443
    %v685 = vunpack.c.l.b16 %v444
    %v686 = vunpack.c.l.b16 %v445
    %v687 = vunpack.c.l.b16 %v446
    %v688 = vunpack.c.l.b16 %v447
    %v689 = vunpack.c.l.b16 %v448
    %v690 = vunpack.c.l.b16 %v449
    %v691 = vunpack.c.l.b16 %v450
    %v692 = vunpack.c.l.b16 %v451
    %v693 = vunpack.c.l.b16 %v452
    %v694 = vunpack.c.l.b16 %v453
    %v695 = vunpack.c.l.b16 %v454
    %v696 = vunpack.c.l.b16 %v455
    %v697 = vunpack.c.l.b16 %v456
    %v698 = vunpack.c.l.b16 %v457
    %v699 = vunpack.c.l.b16 %v458
    %v700 = vunpack.c.l.b16 %v459
    %v701 = vunpack.c.l.b16 %v460
    %v702 = vunpack.c.l.b16 %v461
    %v703 = vunpack.c.l.b16 %v462
    %v704 = vunpack.c.l.b16 %v463
    %v705 = vunpack.c.l.b16 %v464
    %v706 = vunpack.c.l.b16 %v465
    %v707 = vunpack.c.l.b16 %v466
    %v708 = vunpack.c.l.b16 %v467
    %v709 = vunpack.c.l.b16 %v468
    %v710 = vunpack.c.l.b16 %v469
    %v711 = vunpack.c.l.b16 %v470
    %v712 = vunpack.c.l.b16 %v471
    %v713 = vunpack.c.l.b16 %v472
    %v714 = vunpack.c.l.b16 %v473
    %v715 = vunpack.c.l.b16 %v474
    %v716 = vunpack.c.l.b16 %v475
    %v717 = vunpack.c.l.b16 %v476
    %v718 = vunpack.c.l.b16 %v477
    %v719 = vunpack.c.l.b16 %v478
    %v720 = vunpack.c.l.b16 %v479
    %v721 = vunpack.c.l.b16 %v480
    %v722 = vunpack.c.l.b16 %v481
    %v723 = vunpack.c.l.b16 %v482
    %v724 = vunpack.c.l.b16 %v483
    %v725 = vunpack.c.l.b16 %v484
    %v726 = vunpack.c.l.b16 %v485
    %v727 = vunpack.c.l.b16 %v486
    %v728 = vunpack.c.l.b16 %v487
    %v729 = vunpack.c.l.b16 %v488
    %v730 = vunpack.c.l.b16 %v489
    %v731 = vunpack.c.l.b16 %v490
    %v732 = vunpack.c.l.b16 %v491
    %v733 = vunpack.c.l.b16 %v492
    %v734 = vunpack.c.l.b16 %v493
    %v735 = vunpack.c.l.b16 %v494
    %v736 = vunpack.c.l.b16 %v495
    %v737 = vunpack.c.l.b16 %v496
    %v738 = vunpack.c.l.b16 %v497
    %v739 = vunpack.c.l.b16 %v498
    %v740 = vunpack.c.l.b16 %v499
    %v741 = vunpack.c.l.b16 %v500
    %v742 = vunpack.c.l.b16 %v501
    %v743 = vunpack.c.l.b16 %v502
    %v744 = vunpack.c.l.b16 %v503
    %v745 = vunpack.c.l.b16 %v504
    %v746 = vunpack.c.l.b16 %v505
    %v747 = vunpack.c.l.b16 %v506
    %v748 = vunpack.c.l.b16 %v507
    %v749 = vpack.c.b16 %v654, %v653
    %v750 = vpack.c.b16 %v656, %v655
    %v751 = vpack.c.b16 %v658, %v657
    %v752 = vpack.c.b16 %v660, %v659
    %v753 = vpack.c.b16 %v662, %v661
    %v754 = vpack.c.b16 %v664, %v663
    %v755 = vpack.c.b16 %v666, %v665
    %v756 = vpack.c.b16 %v668, %v667
    %v757 = vpack.c.b16 %v670, %v669
    %v758 = vpack.c.b16 %v672, %v671
    %v759 = vpack.c.b16 %v674, %v673
    %v760 = vpack.c.b16 %v676, %v675
    %v761 = vpack.c.b16 %v678, %v677
    %v762 = vpack.c.b16 %v680, %v679
    %v763 = vpack.c.b16 %v682, %v681
    %v764 = vpack.c.b16 %v684, %v683
    %v765 = vpack.c.b16 %v686, %v685
    %v766 = vpack.c.b16 %v688, %v687
    %v767 = vpack.c.b16 %v690, %v689
    %v768 = vpack.c.b16 %v692, %v691
    %v769 = vpack.c.b16 %v694, %v693
    %v770 = vpack.c.b16 %v696, %v695
    %v771 = vpack.c.b16 %v698, %v697
    %v772 = vpack.c.b16 %v700, %v699
    %v773 = vpack.c.b16 %v702, %v701
    %v774 = vpack.c.b16 %v704, %v703
    %v775 = vpack.c.b16 %v706, %v705
    %v776 = vpack.c.b16 %v708, %v707
    %v777 = vpack.c.b16 %v710, %v709
    %v778 = vpack.c.b16 %v712, %v711
    %v779 = vpack.c.b16 %v714, %v713
    %v780 = vpack.c.b16 %v716, %v715
    %v781 = vpack.c.b16 %v718, %v717
    %v782 = vpack.c.b16 %v720, %v719
    %v783 = vpack.c.b16 %v722, %v721
    %v784 = vpack.c.b16 %v724, %v723
    %v785 = vpack.c.b16 %v726, %v725
    %v786 = vpack.c.b16 %v728, %v727
    %v787 = vpack.c.b16 %v730, %v729
    %v788 = vpack.c.b16 %v732, %v731
    %v789 = vpack.c.b16 %v734, %v733
    %v790 = vpack.c.b16 %v736, %v735
    %v791 = vpack.c.b16 %v738, %v737
    %v792 = vpack.c.b16 %v740, %v739
    %v793 = vpack.c.b16 %v742, %v741
    %v794 = vpack.c.b16 %v744, %v743
    %v795 = vpack.c.b16 %v746, %v745
    %v796 = vpack.c.b16 %v748, %v747
    %845 = vmatprep.subr.bf16.mxu0 0
    %846 = vmatpush1.bf16.msra.mxu0 %v749
    %847 = vmatprep.subr.bf16.mxu0 0
    %848 = vmatpush1.bf16.msra.mxu0 %v750
    %849 = vmatprep.subr.bf16.mxu0 0
    %850 = vmatpush1.bf16.msra.mxu0 %v751
    %851 = vmatprep.subr.bf16.mxu0 0
    %852 = vmatpush1.bf16.msra.mxu0 %v752
    %853 = vmatprep.subr.bf16.mxu0 0
    %854 = vmatpush1.bf16.msra.mxu0 %v753
    %855 = vmatprep.subr.bf16.mxu0 0
    %856 = vmatpush1.bf16.msra.mxu0 %v754
    %857 = vmatprep.subr.bf16.mxu0 0
    %858 = vmatpush1.bf16.msra.mxu0 %v755
    %859 = vmatprep.subr.bf16.mxu0 0
    %860 = vmatpush1.bf16.msra.mxu0 %v756
    %861 = vmatprep.subr.bf16.mxu0 0
    %862 = vmatpush1.bf16.msra.mxu0 %v757
    %863 = vmatprep.subr.bf16.mxu0 0
    %864 = vmatpush1.bf16.msra.mxu0 %v758
    %865 = vmatprep.subr.bf16.mxu0 0
    %866 = vmatpush1.bf16.msra.mxu0 %v759
    %867 = vmatprep.subr.bf16.mxu0 0
    %868 = vmatpush1.bf16.msra.mxu0 %v760
    %869 = vmatprep.subr.bf16.mxu0 0
    %870 = vmatpush1.bf16.msra.mxu0 %v761
    %871 = vmatprep.subr.bf16.mxu0 0
    %872 = vmatpush1.bf16.msra.mxu0 %v762
    %873 = vmatprep.subr.bf16.mxu0 0
    %874 = vmatpush1.bf16.msra.mxu0 %v763
    %875 = vmatprep.subr.bf16.mxu0 0
    %876 = vmatpush1.bf16.msra.mxu0 %v764
    %877 = vmatprep.mubr.bf16.mxu0 %v546
    %878 = vmatmul.mubr.bf16.gmra.mrb[0].mxu0 %v545
    %v879 = vpop.f32.mrb[0].mxu0
    %v880 = vadd.f32 0.0, %v879
    %v881 = vpop.f32.mrb[0].mxu0
    %v882 = vpop.f32.mrb[0].mxu0
    %v883 = vpop.f32.mrb[0].mxu0
    %884 = vdwg.mxu0
    %885 = vmatprep.subr.bf16.mxu0 0
    %886 = vmatpush1.bf16.msra.mxu0 %v765
    %887 = vmatprep.subr.bf16.mxu0 0
    %888 = vmatpush1.bf16.msra.mxu0 %v766
    %889 = vmatprep.subr.bf16.mxu0 0
    %890 = vmatpush1.bf16.msra.mxu0 %v767
    %891 = vmatprep.subr.bf16.mxu0 0
    %892 = vmatpush1.bf16.msra.mxu0 %v768
    %893 = vmatprep.subr.bf16.mxu0 0
    %894 = vmatpush1.bf16.msra.mxu0 %v769
    %895 = vmatprep.subr.bf16.mxu0 0
    %896 = vmatpush1.bf16.msra.mxu0 %v770
    %897 = vmatprep.subr.bf16.mxu0 0
    %898 = vmatpush1.bf16.msra.mxu0 %v771
    %899 = vmatprep.subr.bf16.mxu0 0
    %900 = vmatpush1.bf16.msra.mxu0 %v772
    %901 = vmatprep.subr.bf16.mxu0 0
    %902 = vmatpush1.bf16.msra.mxu0 %v773
    %903 = vmatprep.subr.bf16.mxu0 0
    %904 = vmatpush1.bf16.msra.mxu0 %v774
    %905 = vmatprep.subr.bf16.mxu0 0
    %906 = vmatpush1.bf16.msra.mxu0 %v775
    %907 = vmatprep.subr.bf16.mxu0 0
    %908 = vmatpush1.bf16.msra.mxu0 %v776
    %909 = vmatprep.subr.bf16.mxu0 0
    %910 = vmatpush1.bf16.msra.mxu0 %v777
    %911 = vmatprep.subr.bf16.mxu0 0
    %912 = vmatpush1.bf16.msra.mxu0 %v778
    %913 = vmatprep.subr.bf16.mxu0 0
    %914 = vmatpush1.bf16.msra.mxu0 %v779
    %915 = vmatprep.subr.bf16.mxu0 0
    %916 = vmatpush1.bf16.msra.mxu0 %v780
    %917 = vmatprep.mubr.bf16.mxu0 %v548
    %918 = vmatmul.mubr.bf16.gmra.mrb[0].mxu0 %v547
    %v919 = vpop.f32.mrb[0].mxu0
    %v920 = vadd.f32 %v880, %v919
    %v921 = vpop.f32.mrb[0].mxu0
    %v922 = vpop.f32.mrb[0].mxu0
    %v923 = vpop.f32.mrb[0].mxu0
    %924 = vdwg.mxu0
    %925 = vmatprep.subr.bf16.mxu0 0
    %926 = vmatpush1.bf16.msra.mxu0 %v781
    %927 = vmatprep.subr.bf16.mxu0 0
    %928 = vmatpush1.bf16.msra.mxu0 %v782
    %929 = vmatprep.subr.bf16.mxu0 0
    %930 = vmatpush1.bf16.msra.mxu0 %v783
    %931 = vmatprep.subr.bf16.mxu0 0
    %932 = vmatpush1.bf16.msra.mxu0 %v784
    %933 = vmatprep.subr.bf16.mxu0 0
    %934 = vmatpush1.bf16.msra.mxu0 %v785
    %935 = vmatprep.subr.bf16.mxu0 0
    %936 = vmatpush1.bf16.msra.mxu0 %v786
    %937 = vmatprep.subr.bf16.mxu0 0
    %938 = vmatpush1.bf16.msra.mxu0 %v787
    %939 = vmatprep.subr.bf16.mxu0 0
    %940 = vmatpush1.bf16.msra.mxu0 %v788
    %941 = vmatprep.subr.bf16.mxu0 0
    %942 = vmatpush1.bf16.msra.mxu0 %v789
    %943 = vmatprep.subr.bf16.mxu0 0
    %944 = vmatpush1.bf16.msra.mxu0 %v790
    %945 = vmatprep.subr.bf16.mxu0 0
    %946 = vmatpush1.bf16.msra.mxu0 %v791
    %947 = vmatprep.subr.bf16.mxu0 0
    %948 = vmatpush1.bf16.msra.mxu0 %v792
    %949 = vmatprep.subr.bf16.mxu0 0
    %950 = vmatpush1.bf16.msra.mxu0 %v793
    %951 = vmatprep.subr.bf16.mxu0 0
    %952 = vmatpush1.bf16.msra.mxu0 %v794
    %953 = vmatprep.subr.bf16.mxu0 0
    %954 = vmatpush1.bf16.msra.mxu0 %v795
    %955 = vmatprep.subr.bf16.mxu0 0
    %956 = vmatpush1.bf16.msra.mxu0 %v796
    %957 = vmatprep.mubr.bf16.mxu0 %v550
    %958 = vmatmul.mubr.bf16.gmra.mrb[0].mxu0 %v549
    %v959 = vpop.f32.mrb[0].mxu0
    %v960 = vadd.f32 %v920, %v959
    %v961 = vpop.f32.mrb[0].mxu0
    %v962 = vpop.f32.mrb[0].mxu0
    %v963 = vpop.f32.mrb[0].mxu0
    %964 = vdwg.mxu0
    %v965 = vadd.f32 %v399, %v960
    %966 = vst [vmem:[#allocation2] sm:$0x3] %v965
    // Predicated region
    $region26: #{video_reward_forward.1} parent=1 // pred_check
      %p967 = pneg %p22
    $region27: #{video_reward_forward.1} parent=1 // pred_check_branch
      %969 = sbr.rel (%p967) target = $region29
    $region28: #{video_reward_forward.1} parent=1 // pred_region
      %v970 = vld [vmem:[#allocation2] sm:$0x3]
      %v971 = vmul.f32 %v970, 0.125
      %v972 = vld [vmem:[%s2] sm:$0x1]
      %v974 = vlaneseq
      %v975 = vshrl.u32 %v974, 7
      %v976 = vsub.s32 0, %v975
      %v977 = vrot.slane %v972, %v976
      %v979 = vadd.f32 %v971, %v977
      %v980 = vld [vmem:[%s3] sm:$0xff]
      %v981 = vld [vmem:[%s3 + $0x8] sm:$0xff]
      %v982 = vld [vmem:[%s3 + $0x10] sm:$0xff]
      %v983 = vld [vmem:[%s3 + $0x18] sm:$0xff]
      %v984 = vld [vmem:[%s3 + $0x20] sm:$0xff]
      %v985 = vld [vmem:[%s3 + $0x28] sm:$0xff]
      %v986 = vld [vmem:[%s3 + $0x30] sm:$0xff]
      %v987 = vld [vmem:[%s3 + $0x38] sm:$0xff]
      %v988 = vld [vmem:[%s3 + $0x40] sm:$0xff]
      %v989 = vld [vmem:[%s3 + $0x48] sm:$0xff]
      %v990 = vld [vmem:[%s3 + $0x50] sm:$0xff]
      %v991 = vld [vmem:[%s3 + $0x58] sm:$0xff]
      %v992 = vld [vmem:[%s3 + $0x60] sm:$0xff]
      %v993 = vld [vmem:[%s3 + $0x68] sm:$0xff]
      %v994 = vld [vmem:[%s3 + $0x70] sm:$0xff]
      %v995 = vld [vmem:[%s3 + $0x78] sm:$0xff]
      %v996 = vld [vmem:[%s4] sm:$0x1]
      %v998 = vlaneseq
      %v999 = vshrl.u32 %v998, 7
      %v1000 = vsub.s32 0, %v999
      %v1001 = vrot.slane %v996, %v1000
      %1003 = vmatprep.subr.mxu0 0.0
      %1004 = vmatpush1.msra.mxu0 %v980
      %1005 = vmatprep.subr.mxu0 0.0
      %1006 = vmatpush1.msra.mxu0 %v981
      %1007 = vmatprep.subr.mxu0 0.0
      %1008 = vmatpush1.msra.mxu0 %v982
      %1009 = vmatprep.subr.mxu0 0.0
      %1010 = vmatpush1.msra.mxu0 %v983
      %1011 = vmatprep.subr.mxu0 0.0
      %1012 = vmatpush1.msra.mxu0 %v984
      %1013 = vmatprep.subr.mxu0 0.0
      %1014 = vmatpush1.msra.mxu0 %v985
      %1015 = vmatprep.subr.mxu0 0.0
      %1016 = vmatpush1.msra.mxu0 %v986
      %1017 = vmatprep.subr.mxu0 0.0
      %1018 = vmatpush1.msra.mxu0 %v987
      %1019 = vmatprep.subr.mxu0 0.0
      %1020 = vmatpush1.msra.mxu0 %v988
      %1021 = vmatprep.subr.mxu0 0.0
      %1022 = vmatpush1.msra.mxu0 %v989
      %1023 = vmatprep.subr.mxu0 0.0
      %1024 = vmatpush1.msra.mxu0 %v990
      %1025 = vmatprep.subr.mxu0 0.0
      %1026 = vmatpush1.msra.mxu0 %v991
      %1027 = vmatprep.subr.mxu0 0.0
      %1028 = vmatpush1.msra.mxu0 %v992
      %1029 = vmatprep.subr.mxu0 0.0
      %1030 = vmatpush1.msra.mxu0 %v993
      %1031 = vmatprep.subr.mxu0 0.0
      %1032 = vmatpush1.msra.mxu0 %v994
      %1033 = vmatprep.subr.mxu0 0.0
      %1034 = vmatpush1.msra.mxu0 %v995
      %1035 = vmatprep.subr.mxu0 0.0
      %1036 = vmatpush1.msra.mxu0 0.0
      %1037 = vmatprep.subr.mxu0 0.0
      %1038 = vmatpush1.msra.mxu0 0.0
      %1039 = vmatprep.subr.mxu0 0.0
      %1040 = vmatpush1.msra.mxu0 0.0
      %1041 = vmatprep.subr.mxu0 0.0
      %1042 = vmatpush1.msra.mxu0 0.0
      %1043 = vmatprep.subr.mxu0 0.0
      %1044 = vmatpush1.msra.mxu0 0.0
      %1045 = vmatprep.subr.mxu0 0.0
      %1046 = vmatpush1.msra.mxu0 0.0
      %1047 = vmatprep.subr.mxu0 0.0
      %1048 = vmatpush1.msra.mxu0 0.0
      %1049 = vmatprep.subr.mxu0 0.0
      %1050 = vmatpush1.msra.mxu0 0.0
      %1051 = vmatprep.subr.mxu0 0.0
      %1052 = vmatpush1.msra.mxu0 0.0
      %1053 = vmatprep.subr.mxu0 0.0
      %1054 = vmatpush1.msra.mxu0 0.0
      %1055 = vmatprep.subr.mxu0 0.0
      %1056 = vmatpush1.msra.mxu0 0.0
      %1057 = vmatprep.subr.mxu0 0.0
      %1058 = vmatpush1.msra.mxu0 0.0
      %1059 = vmatprep.subr.mxu0 0.0
      %1060 = vmatpush1.msra.mxu0 0.0
      %1061 = vmatprep.subr.mxu0 0.0
      %1062 = vmatpush1.msra.mxu0 0.0
      %1063 = vmatprep.subr.mxu0 0.0
      %1064 = vmatpush1.msra.mxu0 0.0
      %1065 = vmatprep.subr.mxu0 0.0
      %1066 = vmatpush1.msra.mxu0 0.0
      %1067 = vmatprep.mubr.f32.mxu0 0.0
      %1068 = vmatmul.mubr.f32.gmra.mrb[0].mxu0 %v979
      %v1069 = vpop.f32.mrb[0].mxu0
      %v1070 = vadd.f32 %v1001, %v1069
      %v1071 = vpop.f32.mrb[0].mxu0
      %1072 = vdwg.mxu0
      %1073 = vst [vmem:[#allocation3] sm:$0x3] %v1070
    $region29: #{video_reward_forward.1} parent=1 // pred_fallthru
      _
    // Predicated region
    $region30: #{video_reward_forward.1} parent=1 // pred_check
      _
    $region31: #{video_reward_forward.1} parent=1 // pred_check_branch
      %1075 = sbr.rel (0) target = $region33
    $region32: #{video_reward_forward.1} parent=1 // pred_region
      %s1077 = ssub.s32 32, 32
      %1078 = vsyncadd [#allocation4], %s1077
      %s1080 = sshll.u32 [#allocation3], 4
      %s1081 = int_to_ptr.vmem [resolvable:$true] %s1080
      %1083 = dma.vmem_to_hbm [thread:$0]  %s1081, 32, %s5, [#allocation4]
    $region33: #{video_reward_forward.1} parent=1 // pred_fallthru
      _
    // Predicated region
    $region34: #{video_reward_forward.1} parent=1 // pred_check
      _
    $region35: #{video_reward_forward.1} parent=1 // pred_check_branch
      %1085 = sbr.rel (0) target = $region37
    $region36: #{video_reward_forward.1} parent=1 // pred_region
      %1086 = dma.done [#allocation4], 32
    $region37: #{video_reward_forward.1} parent=1 // pred_fallthru
      _
    %1087 = vsyncpa [#allocation4], 1

</llo_original>
